<compile_context>
chip_gen: v5e
topology: v5e:2x2
jax: 0.10.0
libtpu: 0.0.40
codegen_flags: <defaults>
</compile_context>

<pallas_src>
import jax
import jax.numpy as jnp
from jax.experimental import pallas as pl

EPS = 1e-5
FP = 128          # lane-padded feature width (one vreg lane row)
NUM_CLASSES = 10


# ----------------------------------------------------------------------------
# Fused Pallas kernel: whole forward pass in one launch, activations in VMEM.
# ----------------------------------------------------------------------------
def _make_fused_kernel(num_gcn, num_ff, compute_dtype):
    def kernel(*refs):
        it = iter(refs)
        a_ref = next(it)                                       # (N, N)   bf16
        x_ref = next(it)                                       # (N, FP)  bf16
        conv = [(next(it), next(it)) for _ in range(num_gcn)]  # (FP,FP), (1,FP)
        pool_ref = next(it)                                    # (G, N)   bf16
        ff = [(next(it), next(it)) for _ in range(num_ff)]     # (FP,FP), (1,FP)
        lin_w = next(it)                                       # (FP, FP) bf16
        lin_b = next(it)                                       # (1, FP)  f32
        o_ref = next(it)                                       # (G, FP)  f32

        a = a_ref[...]
        h = x_ref[...]
        # GCN stack:  relu(Â @ (h W') + b')   (BN folded into W', b'; dropout=id)
        for (w_r, b_r) in conv:
            xw = jnp.dot(h.astype(compute_dtype), w_r[...],
                         preferred_element_type=jnp.float32)
            h = jnp.dot(a, xw.astype(compute_dtype),
                        preferred_element_type=jnp.float32) + b_r[...]
            h = jnp.maximum(h, 0.0)
        # global mean pool:  P @ h
        g = jnp.dot(pool_ref[...], h.astype(compute_dtype),
                    preferred_element_type=jnp.float32)
        # FF stack:  relu(g W' + b')   (BN folded)
        for (w_r, b_r) in ff:
            g = jnp.dot(g.astype(compute_dtype), w_r[...],
                        preferred_element_type=jnp.float32) + b_r[...]
            g = jnp.maximum(g, 0.0)
        # final classifier + relu
        out = jnp.dot(g.astype(compute_dtype), lin_w[...],
                      preferred_element_type=jnp.float32) + lin_b[...]
        o_ref[...] = jnp.maximum(out, 0.0)
    return kernel


# ----------------------------------------------------------------------------
# Wrapper: fold eval-mode BN into weights, pad features to 128 lanes, one call.
# ----------------------------------------------------------------------------
def _fold_bn(w, b, gamma, beta, mean, var):
    scale = gamma * jax.lax.rsqrt(var + EPS)          # per-output-feature
    return w * scale[None, :], b * scale + (beta - mean * scale)


def _pad2(a, rows, cols):
    return jnp.pad(a, ((0, rows - a.shape[0]), (0, cols - a.shape[1])))


def gcn_mnist_exp_forward(params, x, a_hat, pool_mat,
                          compute_dtype=jnp.bfloat16):
    """Full eval-mode forward pass as a single fused pallas_call."""
    n = x.shape[0]
    num_graphs = pool_mat.shape[0]
    num_gcn = len(params["convs"])
    num_ff = len(params["ffs"])

    args = [a_hat.astype(compute_dtype),
            _pad2(x, n, FP).astype(compute_dtype)]
    for (w, b, gm, bt, mu, var) in params["convs"]:
        wf, bf = _fold_bn(w, b, gm, bt, mu, var)
        args += [_pad2(wf, FP, FP).astype(compute_dtype),
                 _pad2(bf[None, :], 1, FP).astype(jnp.float32)]
    args.append(pool_mat.astype(compute_dtype))
    for (w, b, gm, bt, mu, var) in params["ffs"]:
        wf, bf = _fold_bn(w, b, gm, bt, mu, var)
        args += [_pad2(wf, FP, FP).astype(compute_dtype),
                 _pad2(bf[None, :], 1, FP).astype(jnp.float32)]
    lw, lb = params["lin"]
    args += [_pad2(lw, FP, FP).astype(compute_dtype),
             _pad2(lb[None, :], 1, FP).astype(jnp.float32)]

    # Advisory cost estimate (padded-shape FLOPs; no transcendentals).
    flops = num_gcn * (2 * n * FP * FP + 2 * n * n * FP)
    flops += 2 * num_graphs * n * FP
    flops += (num_ff + 1) * (2 * num_graphs * FP * FP)
    bytes_accessed = sum(int(a.size) * a.dtype.itemsize for a in args)
    bytes_accessed += num_graphs * FP * 4

    out = pl.pallas_call(
        _make_fused_kernel(num_gcn, num_ff, compute_dtype),
        out_shape=jax.ShapeDtypeStruct((num_graphs, FP), jnp.float32),
        cost_estimate=pl.CostEstimate(flops=flops, transcendentals=0,
                                      bytes_accessed=bytes_accessed),
    )(*args)
    # Only the first NUM_CLASSES lanes are real logits (rest are zero padding).
    return out[:, :NUM_CLASSES]


# ----------------------------------------------------------------------------
# Glue: parameter init, normalized adjacency, pool matrix (plain JAX, traced).
# ----------------------------------------------------------------------------
def _glorot(key, shape):
    fan_in, fan_out = shape
    limit = (6.0 / (fan_in + fan_out)) ** 0.5
    return jax.random.uniform(key, shape, jnp.float32, -limit, limit)


def _bn_defaults(f):
    # PyTorch BatchNorm1d defaults: weight=1, bias=0, running_mean=0, running_var=1
    return (jnp.ones((f,), jnp.float32), jnp.zeros((f,), jnp.float32),
            jnp.zeros((f,), jnp.float32), jnp.ones((f,), jnp.float32))


def init_params(key, num_node_features, num_gcn, num_ff, gcn_h, ff_h):
    params = {"convs": [], "ffs": []}
    for d_in in [num_node_features] + [gcn_h] * (num_gcn - 1):
        key, k = jax.random.split(key)
        params["convs"].append((_glorot(k, (d_in, gcn_h)),
                                jnp.zeros((gcn_h,), jnp.float32))
                               + _bn_defaults(gcn_h))
    for d_in in [gcn_h] + [ff_h] * (num_ff - 1):
        key, k = jax.random.split(key)
        params["ffs"].append((_glorot(k, (d_in, ff_h)),
                              jnp.zeros((ff_h,), jnp.float32))
                             + _bn_defaults(ff_h))
    key, k = jax.random.split(key)
    params["lin"] = (_glorot(k, (ff_h, NUM_CLASSES)),
                     jnp.zeros((NUM_CLASSES,), jnp.float32))
    return params


def normalized_adjacency(edge_index, num_nodes):
    # Â = D^{-1/2} (A + I) D^{-1/2}, identical to PyG GCNConv normalization.
    a = jnp.zeros((num_nodes, num_nodes), jnp.float32)
    a = a.at[edge_index[0], edge_index[1]].set(1.0)
    a = a + jnp.eye(num_nodes, dtype=jnp.float32)
    deg = a.sum(axis=1)
    d_inv_sqrt = jax.lax.rsqrt(deg)
    return a * d_inv_sqrt[:, None] * d_inv_sqrt[None, :]


def make_pool_matrix(batch, num_graphs):
    p = (batch[None, :] == jnp.arange(num_graphs)[:, None]).astype(jnp.float32)
    return p / p.sum(axis=1, keepdims=True)


# ----------------------------------------------------------------------------
if __name__ == "__main__":
    NUM_NODE_FEATURES = 4
    NUM_GCN_LAYERS = 3
    NUM_FF_LAYERS = 2
    GCN_HIDDEN = 32
    FF_HIDDEN = 32
    NODES_PER_GRAPH = 16
    NUM_GRAPHS = 2
    N = NODES_PER_GRAPH * NUM_GRAPHS

    key = jax.random.PRNGKey(0)
    key, kx = jax.random.split(key)
    x = jax.random.normal(kx, (N, NUM_NODE_FEATURES), jnp.float32)

    # deterministic ring graph within each example
    src, dst = [], []
    for gidx in range(NUM_GRAPHS):
        off = gidx * NODES_PER_GRAPH
        for i in range(NODES_PER_GRAPH):
            j = (i + 1) % NODES_PER_GRAPH
            src += [off + i, off + j]
            dst += [off + j, off + i]
    edge_index = jnp.array([src, dst], dtype=jnp.int32)
    batch = jnp.repeat(jnp.arange(NUM_GRAPHS, dtype=jnp.int32), NODES_PER_GRAPH)

    params = init_params(key, NUM_NODE_FEATURES, NUM_GCN_LAYERS,
                         NUM_FF_LAYERS, GCN_HIDDEN, FF_HIDDEN)
    a_hat = normalized_adjacency(edge_index, N)
    pool_mat = make_pool_matrix(batch, NUM_GRAPHS)

    out = gcn_mnist_exp_forward(params, x, a_hat, pool_mat)
    out = jax.block_until_ready(out)
    assert out.shape == (NUM_GRAPHS, NUM_CLASSES)
    assert bool(jnp.all(out >= 0.0))
    print("KERNEL_OK")
</pallas_src>

<mosaic_0001>
module attributes {stable_mosaic.version = 11 : i64} {
  func.func @kernel(%arg0: memref<32x32xbf16, #tpu.memory_space<vmem>>, %arg1: memref<32x128xbf16, #tpu.memory_space<vmem>>, %arg2: memref<128x128xbf16, #tpu.memory_space<vmem>>, %arg3: memref<1x128xf32, #tpu.memory_space<vmem>>, %arg4: memref<128x128xbf16, #tpu.memory_space<vmem>>, %arg5: memref<1x128xf32, #tpu.memory_space<vmem>>, %arg6: memref<128x128xbf16, #tpu.memory_space<vmem>>, %arg7: memref<1x128xf32, #tpu.memory_space<vmem>>, %arg8: memref<2x32xbf16, #tpu.memory_space<vmem>>, %arg9: memref<128x128xbf16, #tpu.memory_space<vmem>>, %arg10: memref<1x128xf32, #tpu.memory_space<vmem>>, %arg11: memref<128x128xbf16, #tpu.memory_space<vmem>>, %arg12: memref<1x128xf32, #tpu.memory_space<vmem>>, %arg13: memref<128x128xbf16, #tpu.memory_space<vmem>>, %arg14: memref<1x128xf32, #tpu.memory_space<vmem>>, %arg15: memref<2x128xf32, #tpu.memory_space<vmem>>) attributes {dimension_semantics = [], scalar_prefetch = 0 : i64, scratch_operands = 0 : i64, tpu.core_type = #tpu.core_type<tc>} {
    %c0 = arith.constant 0 : index
    %c0_0 = arith.constant 0 : index
    %0 = vector.load %arg0[%c0, %c0_0] : memref<32x32xbf16, #tpu.memory_space<vmem>>, vector<32x32xbf16>
    %c0_1 = arith.constant 0 : index
    %c0_2 = arith.constant 0 : index
    %1 = vector.load %arg1[%c0_1, %c0_2] : memref<32x128xbf16, #tpu.memory_space<vmem>>, vector<32x128xbf16>
    %c0_3 = arith.constant 0 : index
    %c0_4 = arith.constant 0 : index
    %2 = vector.load %arg2[%c0_3, %c0_4] : memref<128x128xbf16, #tpu.memory_space<vmem>>, vector<128x128xbf16>
    %cst = arith.constant dense<0.000000e+00> : vector<32x128xf32>
    %3 = tpu.matmul %1, %2, %cst {dimension_numbers = #tpu.dot_dimension_numbers<[1], [0], [0], [1], [0, 0, 1, 1], [], []>} : vector<32x128xbf16>, vector<128x128xbf16>, vector<32x128xf32> -> vector<32x128xf32>
    %4 = arith.truncf %3 : vector<32x128xf32> to vector<32x128xbf16>
    %cst_5 = arith.constant dense<0.000000e+00> : vector<32x128xf32>
    %5 = tpu.matmul %0, %4, %cst_5 {dimension_numbers = #tpu.dot_dimension_numbers<[1], [0], [0], [1], [0, 0, 1, 1], [], []>} : vector<32x32xbf16>, vector<32x128xbf16>, vector<32x128xf32> -> vector<32x128xf32>
    %c0_6 = arith.constant 0 : index
    %c0_7 = arith.constant 0 : index
    %6 = vector.load %arg3[%c0_6, %c0_7] : memref<1x128xf32, #tpu.memory_space<vmem>>, vector<1x128xf32>
    %7 = vector.broadcast %6 : vector<1x128xf32> to vector<32x128xf32>
    %8 = arith.addf %5, %7 : vector<32x128xf32>
    %cst_8 = arith.constant 0.000000e+00 : f32
    %9 = vector.broadcast %cst_8 : f32 to vector<32x128xf32>
    %10 = arith.maximumf %8, %9 : vector<32x128xf32>
    %11 = arith.truncf %10 : vector<32x128xf32> to vector<32x128xbf16>
    %c0_9 = arith.constant 0 : index
    %c0_10 = arith.constant 0 : index
    %12 = vector.load %arg4[%c0_9, %c0_10] : memref<128x128xbf16, #tpu.memory_space<vmem>>, vector<128x128xbf16>
    %cst_11 = arith.constant dense<0.000000e+00> : vector<32x128xf32>
    %13 = tpu.matmul %11, %12, %cst_11 {dimension_numbers = #tpu.dot_dimension_numbers<[1], [0], [0], [1], [0, 0, 1, 1], [], []>} : vector<32x128xbf16>, vector<128x128xbf16>, vector<32x128xf32> -> vector<32x128xf32>
    %14 = arith.truncf %13 : vector<32x128xf32> to vector<32x128xbf16>
    %cst_12 = arith.constant dense<0.000000e+00> : vector<32x128xf32>
    %15 = tpu.matmul %0, %14, %cst_12 {dimension_numbers = #tpu.dot_dimension_numbers<[1], [0], [0], [1], [0, 0, 1, 1], [], []>} : vector<32x32xbf16>, vector<32x128xbf16>, vector<32x128xf32> -> vector<32x128xf32>
    %c0_13 = arith.constant 0 : index
    %c0_14 = arith.constant 0 : index
    %16 = vector.load %arg5[%c0_13, %c0_14] : memref<1x128xf32, #tpu.memory_space<vmem>>, vector<1x128xf32>
    %17 = vector.broadcast %16 : vector<1x128xf32> to vector<32x128xf32>
    %18 = arith.addf %15, %17 : vector<32x128xf32>
    %cst_15 = arith.constant 0.000000e+00 : f32
    %19 = vector.broadcast %cst_15 : f32 to vector<32x128xf32>
    %20 = arith.maximumf %18, %19 : vector<32x128xf32>
    %21 = arith.truncf %20 : vector<32x128xf32> to vector<32x128xbf16>
    %c0_16 = arith.constant 0 : index
    %c0_17 = arith.constant 0 : index
    %22 = vector.load %arg6[%c0_16, %c0_17] : memref<128x128xbf16, #tpu.memory_space<vmem>>, vector<128x128xbf16>
    %cst_18 = arith.constant dense<0.000000e+00> : vector<32x128xf32>
    %23 = tpu.matmul %21, %22, %cst_18 {dimension_numbers = #tpu.dot_dimension_numbers<[1], [0], [0], [1], [0, 0, 1, 1], [], []>} : vector<32x128xbf16>, vector<128x128xbf16>, vector<32x128xf32> -> vector<32x128xf32>
    %24 = arith.truncf %23 : vector<32x128xf32> to vector<32x128xbf16>
    %cst_19 = arith.constant dense<0.000000e+00> : vector<32x128xf32>
    %25 = tpu.matmul %0, %24, %cst_19 {dimension_numbers = #tpu.dot_dimension_numbers<[1], [0], [0], [1], [0, 0, 1, 1], [], []>} : vector<32x32xbf16>, vector<32x128xbf16>, vector<32x128xf32> -> vector<32x128xf32>
    %c0_20 = arith.constant 0 : index
    %c0_21 = arith.constant 0 : index
    %26 = vector.load %arg7[%c0_20, %c0_21] : memref<1x128xf32, #tpu.memory_space<vmem>>, vector<1x128xf32>
    %27 = vector.broadcast %26 : vector<1x128xf32> to vector<32x128xf32>
    %28 = arith.addf %25, %27 : vector<32x128xf32>
    %cst_22 = arith.constant 0.000000e+00 : f32
    %29 = vector.broadcast %cst_22 : f32 to vector<32x128xf32>
    %30 = arith.maximumf %28, %29 : vector<32x128xf32>
    %c0_23 = arith.constant 0 : index
    %c0_24 = arith.constant 0 : index
    %31 = vector.load %arg8[%c0_23, %c0_24] : memref<2x32xbf16, #tpu.memory_space<vmem>>, vector<2x32xbf16>
    %32 = arith.truncf %30 : vector<32x128xf32> to vector<32x128xbf16>
    %cst_25 = arith.constant dense<0.000000e+00> : vector<2x128xf32>
    %33 = tpu.matmul %31, %32, %cst_25 {dimension_numbers = #tpu.dot_dimension_numbers<[1], [0], [0], [1], [0, 0, 1, 1], [], []>} : vector<2x32xbf16>, vector<32x128xbf16>, vector<2x128xf32> -> vector<2x128xf32>
    %34 = arith.truncf %33 : vector<2x128xf32> to vector<2x128xbf16>
    %c0_26 = arith.constant 0 : index
    %c0_27 = arith.constant 0 : index
    %35 = vector.load %arg9[%c0_26, %c0_27] : memref<128x128xbf16, #tpu.memory_space<vmem>>, vector<128x128xbf16>
    %cst_28 = arith.constant dense<0.000000e+00> : vector<2x128xf32>
    %36 = tpu.matmul %34, %35, %cst_28 {dimension_numbers = #tpu.dot_dimension_numbers<[1], [0], [0], [1], [0, 0, 1, 1], [], []>} : vector<2x128xbf16>, vector<128x128xbf16>, vector<2x128xf32> -> vector<2x128xf32>
    %c0_29 = arith.constant 0 : index
    %c0_30 = arith.constant 0 : index
    %37 = vector.load %arg10[%c0_29, %c0_30] : memref<1x128xf32, #tpu.memory_space<vmem>>, vector<1x128xf32>
    %38 = vector.broadcast %37 : vector<1x128xf32> to vector<2x128xf32>
    %39 = arith.addf %36, %38 : vector<2x128xf32>
    %cst_31 = arith.constant 0.000000e+00 : f32
    %40 = vector.broadcast %cst_31 : f32 to vector<2x128xf32>
    %41 = arith.maximumf %39, %40 : vector<2x128xf32>
    %42 = arith.truncf %41 : vector<2x128xf32> to vector<2x128xbf16>
    %c0_32 = arith.constant 0 : index
    %c0_33 = arith.constant 0 : index
    %43 = vector.load %arg11[%c0_32, %c0_33] : memref<128x128xbf16, #tpu.memory_space<vmem>>, vector<128x128xbf16>
    %cst_34 = arith.constant dense<0.000000e+00> : vector<2x128xf32>
    %44 = tpu.matmul %42, %43, %cst_34 {dimension_numbers = #tpu.dot_dimension_numbers<[1], [0], [0], [1], [0, 0, 1, 1], [], []>} : vector<2x128xbf16>, vector<128x128xbf16>, vector<2x128xf32> -> vector<2x128xf32>
    %c0_35 = arith.constant 0 : index
    %c0_36 = arith.constant 0 : index
    %45 = vector.load %arg12[%c0_35, %c0_36] : memref<1x128xf32, #tpu.memory_space<vmem>>, vector<1x128xf32>
    %46 = vector.broadcast %45 : vector<1x128xf32> to vector<2x128xf32>
    %47 = arith.addf %44, %46 : vector<2x128xf32>
    %cst_37 = arith.constant 0.000000e+00 : f32
    %48 = vector.broadcast %cst_37 : f32 to vector<2x128xf32>
    %49 = arith.maximumf %47, %48 : vector<2x128xf32>
    %50 = arith.truncf %49 : vector<2x128xf32> to vector<2x128xbf16>
    %c0_38 = arith.constant 0 : index
    %c0_39 = arith.constant 0 : index
    %51 = vector.load %arg13[%c0_38, %c0_39] : memref<128x128xbf16, #tpu.memory_space<vmem>>, vector<128x128xbf16>
    %cst_40 = arith.constant dense<0.000000e+00> : vector<2x128xf32>
    %52 = tpu.matmul %50, %51, %cst_40 {dimension_numbers = #tpu.dot_dimension_numbers<[1], [0], [0], [1], [0, 0, 1, 1], [], []>} : vector<2x128xbf16>, vector<128x128xbf16>, vector<2x128xf32> -> vector<2x128xf32>
    %c0_41 = arith.constant 0 : index
    %c0_42 = arith.constant 0 : index
    %53 = vector.load %arg14[%c0_41, %c0_42] : memref<1x128xf32, #tpu.memory_space<vmem>>, vector<1x128xf32>
    %54 = vector.broadcast %53 : vector<1x128xf32> to vector<2x128xf32>
    %55 = arith.addf %52, %54 : vector<2x128xf32>
    %cst_43 = arith.constant 0.000000e+00 : f32
    %56 = vector.broadcast %cst_43 : f32 to vector<2x128xf32>
    %57 = arith.maximumf %55, %56 : vector<2x128xf32>
    %c0_44 = arith.constant 0 : index
    %c0_45 = arith.constant 0 : index
    %58 = vector.load %arg15[%c0_44, %c0_45] : memref<2x128xf32, #tpu.memory_space<vmem>>, vector<2x128xf32>
    tpu.vector_store %arg15[%c0_44, %c0_45], %57 {strides = array<i32>} : memref<2x128xf32, #tpu.memory_space<vmem>>, vector<2x128xf32>,
    return
  }
}

</mosaic_0001>

<llo_original>
// kernel: tpu_custom_call.1
$region0: #{tpu_custom_call.1}
  #allocation0 [shape = 'u32[]', space=smem, size = 0x4, offset = 0x4, fixed_abs, tag = 'smem constant byte address 0x4 - core index']
  #allocation1 [shape = 'u32[72,128]{1,0:T(1,128)}', space=vmem, size = 0x9000, scoped, tag = 'internal scratch']
  %s0 = inlined_call_operand.hbm [shape: bf16[32,32], index: 0, kind: input, shape index: {}]
  %s1 = inlined_call_operand.hbm [shape: bf16[32,128], index: 1, kind: input, shape index: {}]
  %s2 = inlined_call_operand.hbm [shape: bf16[128,128], index: 2, kind: input, shape index: {}]
  %s3 = inlined_call_operand.vmem [shape: f32[1,128], index: 3, kind: input, shape index: {}]
  %s4 = inlined_call_operand.hbm [shape: bf16[128,128], index: 4, kind: input, shape index: {}]
  %s5 = inlined_call_operand.vmem [shape: f32[1,128], index: 5, kind: input, shape index: {}]
  %s6 = inlined_call_operand.hbm [shape: bf16[128,128], index: 6, kind: input, shape index: {}]
  %s7 = inlined_call_operand.vmem [shape: f32[1,128], index: 7, kind: input, shape index: {}]
  %s8 = inlined_call_operand.vmem [shape: bf16[2,32], index: 8, kind: input, shape index: {}]
  %s9 = inlined_call_operand.hbm [shape: bf16[128,128], index: 9, kind: input, shape index: {}]
  %s10 = inlined_call_operand.vmem [shape: f32[1,128], index: 10, kind: input, shape index: {}]
  %s11 = inlined_call_operand.hbm [shape: bf16[128,128], index: 11, kind: input, shape index: {}]
  %s12 = inlined_call_operand.vmem [shape: f32[1,128], index: 12, kind: input, shape index: {}]
  %s13 = inlined_call_operand.hbm [shape: bf16[128,128], index: 13, kind: input, shape index: {}]
  %s14 = inlined_call_operand.vmem [shape: f32[1,128], index: 14, kind: input, shape index: {}]
  %s15 = inlined_call_operand.hbm [shape: f32[2,128], index: 15, kind: output, shape index: {}]
  %s16 = sld [smem:[#allocation0]]
  $region102: #{tpu_custom_call.1} parent=0
    _
  %s18 = ssub.s32 1, %s16
  %s19 = scalar_select 0, %s18, %s16
  $region1: #{tpu_custom_call.1} parent=0
    #allocation2 [shape = 'u8[8192]{0}', space=vmem, size = 0x2000, scoped, tag = 'input window, operand 0, single buffered']
    #allocation3 [shape = 's32[1]{0}', space=sflag, size = 0x4, scoped, tag = 'scoped memory for tpu_custom_call.1']
    #allocation4 [shape = 's32[1]{0}', space=sflag, size = 0x4, scoped, tag = 'scoped memory for tpu_custom_call.1']
    #allocation5 [shape = 'u8[8192]{0}', space=vmem, size = 0x2000, scoped, tag = 'input window, operand 1, single buffered']
    #allocation6 [shape = 's32[1]{0}', space=sflag, size = 0x4, scoped, tag = 'scoped memory for tpu_custom_call.1']
    #allocation7 [shape = 'u8[32768]{0}', space=vmem, size = 0x8000, scoped, tag = 'input window, operand 2, single buffered']
    #allocation8 [shape = 'u8[32768]{0}', space=vmem, size = 0x8000, scoped, tag = 'input window, operand 4, single buffered']
    #allocation9 [shape = 's32[1]{0}', space=sflag, size = 0x4, scoped, tag = 'scoped memory for tpu_custom_call.1']
    #allocation10 [shape = 'u8[32768]{0}', space=vmem, size = 0x8000, scoped, tag = 'input window, operand 6, single buffered']
    #allocation11 [shape = 'u8[32768]{0}', space=vmem, size = 0x8000, scoped, tag = 'input window, operand 9, single buffered']
    #allocation12 [shape = 's32[1]{0}', space=sflag, size = 0x4, scoped, tag = 'scoped memory for tpu_custom_call.1']
    #allocation13 [shape = 'u8[32768]{0}', space=vmem, size = 0x8000, scoped, tag = 'input window, operand 11, single buffered']
    #allocation14 [shape = 'u8[32768]{0}', space=vmem, size = 0x8000, scoped, tag = 'input window, operand 13, single buffered']
    #allocation15 [shape = 's32[1]{0}', space=sflag, size = 0x4, scoped, tag = 'scoped memory for tpu_custom_call.1']
    #allocation16 [shape = 'u8[1024]{0}', space=vmem, size = 0x400, scoped, tag = 'output window, operand 0, single buffered']
    %20 = vsyncpa [#allocation3], 0
    %21 = vsyncpa [#allocation6], 0
    %22 = vsyncpa [#allocation9], 0
    %23 = vsyncpa [#allocation12], 0
    %24 = vsyncpa [#allocation15], 0
    %25 = vsyncpa [#allocation4], 0
    // Predicated region
    $region2: #{tpu_custom_call.1} parent=1 // pred_check
      _
    $region3: #{tpu_custom_call.1} parent=1 // pred_check_branch
      %27 = sbr.rel (0) target = $region5
    $region4: #{tpu_custom_call.1} parent=1 // pred_region
      %29 = vsyncadd [#allocation3], 0
      %s30 = sshll.u32 %s0, 4
      %s31 = int_to_ptr.hbm [resolvable:$true] %s30
      %s32 = sshll.u32 [#allocation2], 4
      %s33 = int_to_ptr.vmem [resolvable:$true] %s32
      %38 = dma.hbm_to_vmem [thread:$0]  %s31, 256, %s33, [#allocation3], 64, 64, 4
    $region5: #{tpu_custom_call.1} parent=1 // pred_fallthru
      _
    // Predicated region
    $region6: #{tpu_custom_call.1} parent=1 // pred_check
      _
    $region7: #{tpu_custom_call.1} parent=1 // pred_check_branch
      %40 = sbr.rel (0) target = $region9
    $region8: #{tpu_custom_call.1} parent=1 // pred_region
      %42 = vsyncadd [#allocation6], 0
      %s43 = sshll.u32 %s1, 4
      %s44 = int_to_ptr.hbm [resolvable:$true] %s43
      %s45 = sshll.u32 [#allocation5], 4
      %s46 = int_to_ptr.vmem [resolvable:$true] %s45
      %51 = dma.hbm_to_vmem [thread:$0]  %s44, 256, %s46, [#allocation6], 64, 64, 4
    $region9: #{tpu_custom_call.1} parent=1 // pred_fallthru
      _
    // Predicated region
    $region10: #{tpu_custom_call.1} parent=1 // pred_check
      _
    $region11: #{tpu_custom_call.1} parent=1 // pred_check_branch
      %53 = sbr.rel (0) target = $region13
    $region12: #{tpu_custom_call.1} parent=1 // pred_region
      %55 = vsyncadd [#allocation6], 0
      %s56 = sshll.u32 %s2, 4
      %s57 = int_to_ptr.hbm [resolvable:$true] %s56
      %s58 = sshll.u32 [#allocation7], 4
      %s59 = int_to_ptr.vmem [resolvable:$true] %s58
      %64 = dma.hbm_to_vmem [thread:$0]  %s57, 1024, %s59, [#allocation6], 64, 64, 4
    $region13: #{tpu_custom_call.1} parent=1 // pred_fallthru
      _
    // Predicated region
    $region14: #{tpu_custom_call.1} parent=1 // pred_check
      _
    $region15: #{tpu_custom_call.1} parent=1 // pred_check_branch
      %66 = sbr.rel (0) target = $region17
    $region16: #{tpu_custom_call.1} parent=1 // pred_region
      _
    $region17: #{tpu_custom_call.1} parent=1 // pred_fallthru
      _
    // Predicated region
    $region18: #{tpu_custom_call.1} parent=1 // pred_check
      _
    $region19: #{tpu_custom_call.1} parent=1 // pred_check_branch
      %68 = sbr.rel (0) target = $region21
    $region20: #{tpu_custom_call.1} parent=1 // pred_region
      %70 = vsyncadd [#allocation9], 0
      %s71 = sshll.u32 %s4, 4
      %s72 = int_to_ptr.hbm [resolvable:$true] %s71
      %s73 = sshll.u32 [#allocation8], 4
      %s74 = int_to_ptr.vmem [resolvable:$true] %s73
      %79 = dma.hbm_to_vmem [thread:$0]  %s72, 1024, %s74, [#allocation9], 64, 64, 4
    $region21: #{tpu_custom_call.1} parent=1 // pred_fallthru
      _
    // Predicated region
    $region22: #{tpu_custom_call.1} parent=1 // pred_check
      _
    $region23: #{tpu_custom_call.1} parent=1 // pred_check_branch
      %81 = sbr.rel (0) target = $region25
    $region24: #{tpu_custom_call.1} parent=1 // pred_region
      _
    $region25: #{tpu_custom_call.1} parent=1 // pred_fallthru
      _
    // Predicated region
    $region26: #{tpu_custom_call.1} parent=1 // pred_check
      _
    $region27: #{tpu_custom_call.1} parent=1 // pred_check_branch
      %83 = sbr.rel (0) target = $region29
    $region28: #{tpu_custom_call.1} parent=1 // pred_region
      %85 = vsyncadd [#allocation9], 0
      %s86 = sshll.u32 %s6, 4
      %s87 = int_to_ptr.hbm [resolvable:$true] %s86
      %s88 = sshll.u32 [#allocation10], 4
      %s89 = int_to_ptr.vmem [resolvable:$true] %s88
      %94 = dma.hbm_to_vmem [thread:$0]  %s87, 1024, %s89, [#allocation9], 64, 64, 4
    $region29: #{tpu_custom_call.1} parent=1 // pred_fallthru
      _
    // Predicated region
    $region30: #{tpu_custom_call.1} parent=1 // pred_check
      _
    $region31: #{tpu_custom_call.1} parent=1 // pred_check_branch
      %96 = sbr.rel (0) target = $region33
    $region32: #{tpu_custom_call.1} parent=1 // pred_region
      _
    $region33: #{tpu_custom_call.1} parent=1 // pred_fallthru
      _
    // Predicated region
    $region34: #{tpu_custom_call.1} parent=1 // pred_check
      _
    $region35: #{tpu_custom_call.1} parent=1 // pred_check_branch
      %98 = sbr.rel (0) target = $region37
    $region36: #{tpu_custom_call.1} parent=1 // pred_region
      _
    $region37: #{tpu_custom_call.1} parent=1 // pred_fallthru
      _
    // Predicated region
    $region38: #{tpu_custom_call.1} parent=1 // pred_check
      _
    $region39: #{tpu_custom_call.1} parent=1 // pred_check_branch
      %100 = sbr.rel (0) target = $region41
    $region40: #{tpu_custom_call.1} parent=1 // pred_region
      %102 = vsyncadd [#allocation12], 0
      %s103 = sshll.u32 %s9, 4
      %s104 = int_to_ptr.hbm [resolvable:$true] %s103
      %s105 = sshll.u32 [#allocation11], 4
      %s106 = int_to_ptr.vmem [resolvable:$true] %s105
      %111 = dma.hbm_to_vmem [thread:$0]  %s104, 1024, %s106, [#allocation12], 64, 64, 4
    $region41: #{tpu_custom_call.1} parent=1 // pred_fallthru
      _
    // Predicated region
    $region42: #{tpu_custom_call.1} parent=1 // pred_check
      _
    $region43: #{tpu_custom_call.1} parent=1 // pred_check_branch
      %113 = sbr.rel (0) target = $region45
    $region44: #{tpu_custom_call.1} parent=1 // pred_region
      _
    $region45: #{tpu_custom_call.1} parent=1 // pred_fallthru
      _
    // Predicated region
    $region46: #{tpu_custom_call.1} parent=1 // pred_check
      _
    $region47: #{tpu_custom_call.1} parent=1 // pred_check_branch
      %115 = sbr.rel (0) target = $region49
    $region48: #{tpu_custom_call.1} parent=1 // pred_region
      %117 = vsyncadd [#allocation12], 0
      %s118 = sshll.u32 %s11, 4
      %s119 = int_to_ptr.hbm [resolvable:$true] %s118
      %s120 = sshll.u32 [#allocation13], 4
      %s121 = int_to_ptr.vmem [resolvable:$true] %s120
      %126 = dma.hbm_to_vmem [thread:$0]  %s119, 1024, %s121, [#allocation12], 64, 64, 4
    $region49: #{tpu_custom_call.1} parent=1 // pred_fallthru
      _
    // Predicated region
    $region50: #{tpu_custom_call.1} parent=1 // pred_check
      _
    $region51: #{tpu_custom_call.1} parent=1 // pred_check_branch
      %128 = sbr.rel (0) target = $region53
    $region52: #{tpu_custom_call.1} parent=1 // pred_region
      _
    $region53: #{tpu_custom_call.1} parent=1 // pred_fallthru
      _
    // Predicated region
    $region54: #{tpu_custom_call.1} parent=1 // pred_check
      _
    $region55: #{tpu_custom_call.1} parent=1 // pred_check_branch
      %130 = sbr.rel (0) target = $region57
    $region56: #{tpu_custom_call.1} parent=1 // pred_region
      %132 = vsyncadd [#allocation15], 0
      %s133 = sshll.u32 %s13, 4
      %s134 = int_to_ptr.hbm [resolvable:$true] %s133
      %s135 = sshll.u32 [#allocation14], 4
      %s136 = int_to_ptr.vmem [resolvable:$true] %s135
      %141 = dma.hbm_to_vmem [thread:$0]  %s134, 1024, %s136, [#allocation15], 64, 64, 4
    $region57: #{tpu_custom_call.1} parent=1 // pred_fallthru
      _
    // Predicated region
    $region58: #{tpu_custom_call.1} parent=1 // pred_check
      _
    $region59: #{tpu_custom_call.1} parent=1 // pred_check_branch
      %143 = sbr.rel (0) target = $region61
    $region60: #{tpu_custom_call.1} parent=1 // pred_region
      _
    $region61: #{tpu_custom_call.1} parent=1 // pred_fallthru
      _
    // Predicated region
    $region62: #{tpu_custom_call.1} parent=1 // pred_check
      _
    $region63: #{tpu_custom_call.1} parent=1 // pred_check_branch
      %145 = sbr.rel (0) target = $region65
    $region64: #{tpu_custom_call.1} parent=1 // pred_region
      %147 = dma.done [#allocation3], 256
    $region65: #{tpu_custom_call.1} parent=1 // pred_fallthru
      _
    // Predicated region
    $region66: #{tpu_custom_call.1} parent=1 // pred_check
      _
    $region67: #{tpu_custom_call.1} parent=1 // pred_check_branch
      %149 = sbr.rel (0) target = $region69
    $region68: #{tpu_custom_call.1} parent=1 // pred_region
      %151 = dma.done [#allocation6], 256
    $region69: #{tpu_custom_call.1} parent=1 // pred_fallthru
      _
    // Predicated region
    $region70: #{tpu_custom_call.1} parent=1 // pred_check
      _
    $region71: #{tpu_custom_call.1} parent=1 // pred_check_branch
      %153 = sbr.rel (0) target = $region73
    $region72: #{tpu_custom_call.1} parent=1 // pred_region
      %155 = dma.done [#allocation6], 1024
    $region73: #{tpu_custom_call.1} parent=1 // pred_fallthru
      _
    // Predicated region
    $region74: #{tpu_custom_call.1} parent=1 // pred_check
      _
    $region75: #{tpu_custom_call.1} parent=1 // pred_check_branch
      %157 = sbr.rel (0) target = $region77
    $region76: #{tpu_custom_call.1} parent=1 // pred_region
      %159 = dma.done [#allocation9], 1024
    $region77: #{tpu_custom_call.1} parent=1 // pred_fallthru
      _
    // Predicated region
    $region78: #{tpu_custom_call.1} parent=1 // pred_check
      _
    $region79: #{tpu_custom_call.1} parent=1 // pred_check_branch
      %161 = sbr.rel (0) target = $region81
    $region80: #{tpu_custom_call.1} parent=1 // pred_region
      %163 = dma.done [#allocation9], 1024
    $region81: #{tpu_custom_call.1} parent=1 // pred_fallthru
      _
    // Predicated region
    $region82: #{tpu_custom_call.1} parent=1 // pred_check
      _
    $region83: #{tpu_custom_call.1} parent=1 // pred_check_branch
      %165 = sbr.rel (0) target = $region85
    $region84: #{tpu_custom_call.1} parent=1 // pred_region
      %167 = dma.done [#allocation12], 1024
    $region85: #{tpu_custom_call.1} parent=1 // pred_fallthru
      _
    // Predicated region
    $region86: #{tpu_custom_call.1} parent=1 // pred_check
      _
    $region87: #{tpu_custom_call.1} parent=1 // pred_check_branch
      %169 = sbr.rel (0) target = $region89
    $region88: #{tpu_custom_call.1} parent=1 // pred_region
      %171 = dma.done [#allocation12], 1024
    $region89: #{tpu_custom_call.1} parent=1 // pred_fallthru
      _
    // Predicated region
    $region90: #{tpu_custom_call.1} parent=1 // pred_check
      _
    $region91: #{tpu_custom_call.1} parent=1 // pred_check_branch
      %173 = sbr.rel (0) target = $region93
    $region92: #{tpu_custom_call.1} parent=1 // pred_region
      %175 = dma.done [#allocation15], 1024
    $region93: #{tpu_custom_call.1} parent=1 // pred_fallthru
      _
    %v177 = vld [vmem:[#allocation2] sm:$0xf]
    %v178 = vld [vmem:[#allocation2 + $0x4] sm:$0xf]
    %v179 = vld [vmem:[#allocation2 + $0x8] sm:$0xf]
    %v180 = vld [vmem:[#allocation2 + $0xc] sm:$0xf]
    %v181 = vld [vmem:[#allocation5] sm:$0xf]
    %v182 = vld [vmem:[#allocation5 + $0x4] sm:$0xf]
    %v183 = vld [vmem:[#allocation5 + $0x8] sm:$0xf]
    %v184 = vld [vmem:[#allocation5 + $0xc] sm:$0xf]
    %v185 = vld [vmem:[#allocation7] sm:$0xf]
    %v186 = vld [vmem:[#allocation7 + $0x4] sm:$0xf]
    %v187 = vld [vmem:[#allocation7 + $0x8] sm:$0xf]
    %v188 = vld [vmem:[#allocation7 + $0xc] sm:$0xf]
    %v189 = vld [vmem:[#allocation7 + $0x10] sm:$0xf]
    %v190 = vld [vmem:[#allocation7 + $0x14] sm:$0xf]
    %v191 = vld [vmem:[#allocation7 + $0x18] sm:$0xf]
    %v192 = vld [vmem:[#allocation7 + $0x1c] sm:$0xf]
    %v193 = vld [vmem:[#allocation7 + $0x20] sm:$0xf]
    %v194 = vld [vmem:[#allocation7 + $0x24] sm:$0xf]
    %v195 = vld [vmem:[#allocation7 + $0x28] sm:$0xf]
    %v196 = vld [vmem:[#allocation7 + $0x2c] sm:$0xf]
    %v197 = vld [vmem:[#allocation7 + $0x30] sm:$0xf]
    %v198 = vld [vmem:[#allocation7 + $0x34] sm:$0xf]
    %v199 = vld [vmem:[#allocation7 + $0x38] sm:$0xf]
    %v200 = vld [vmem:[#allocation7 + $0x3c] sm:$0xf]
    %v205 = vunpack.c.l.b16 %v181
    %v206 = vunpack.c.l.b16 %v182
    %v207 = vunpack.c.l.b16 %v183
    %v208 = vunpack.c.l.b16 %v184
    %v209 = vpack.c.b16 %v206, %v205
    %v210 = vpack.c.b16 %v208, %v207
    %v229 = vunpack.c.l.b16 %v185
    %v230 = vunpack.c.l.b16 %v186
    %v231 = vunpack.c.l.b16 %v187
    %v232 = vunpack.c.l.b16 %v188
    %v233 = vunpack.c.l.b16 %v189
    %v234 = vunpack.c.l.b16 %v190
    %v235 = vunpack.c.l.b16 %v191
    %v236 = vunpack.c.l.b16 %v192
    %v237 = vunpack.c.l.b16 %v193
    %v238 = vunpack.c.l.b16 %v194
    %v239 = vunpack.c.l.b16 %v195
    %v240 = vunpack.c.l.b16 %v196
    %v241 = vunpack.c.l.b16 %v197
    %v242 = vunpack.c.l.b16 %v198
    %v243 = vunpack.c.l.b16 %v199
    %v244 = vunpack.c.l.b16 %v200
    %v245 = vpack.c.b16 %v230, %v229
    %v246 = vpack.c.b16 %v232, %v231
    %v247 = vpack.c.b16 %v234, %v233
    %v248 = vpack.c.b16 %v236, %v235
    %v249 = vpack.c.b16 %v238, %v237
    %v250 = vpack.c.b16 %v240, %v239
    %v251 = vpack.c.b16 %v242, %v241
    %v252 = vpack.c.b16 %v244, %v243
    %261 = vmatpush.bf16.msra.mxu0 %v252
    %262 = vmatpush.bf16.msra.mxu0 %v251
    %263 = vmatpush.bf16.msra.mxu0 %v250
    %264 = vmatpush.bf16.msra.mxu0 %v249
    %265 = vmatpush.bf16.msra.mxu0 %v248
    %266 = vmatpush.bf16.msra.mxu0 %v247
    %267 = vmatpush.bf16.msra.mxu0 %v246
    %268 = vmatpush.bf16.msra.mxu0 %v245
    %269 = vmatmul.bf16.gmra.mxu0 %v209
    %v270 = vpop.f32.mrf.mxu0
    %v271 = vadd.f32 0.0, %v270
    %v272 = vpop.f32.mrf.mxu0
    %v273 = vadd.f32 0.0, %v272
    %274 = vmatmul.bf16.gmra.mxu0 %v210
    %v275 = vpop.f32.mrf.mxu0
    %v276 = vadd.f32 0.0, %v275
    %v277 = vpop.f32.mrf.mxu0
    %v278 = vadd.f32 0.0, %v277
    %279 = vdwg.mxu0
    %v280 = vpack.c.bf16 %v273, %v271
    %v281 = vpack.c.bf16 %v278, %v276
    %v282 = vld [vmem:[%s3] sm:$0x1]
    %v284 = vperm.slane %v282, 0
    %v290 = vunpack.c.l.b16 %v177
    %v291 = vunpack.c.l.b16 %v178
    %v292 = vunpack.c.l.b16 %v179
    %v293 = vunpack.c.l.b16 %v180
    %v294 = vpack.c.b16 %v291, %v290
    %v295 = vpack.c.b16 %v293, %v292
    %vm296 = vcmask 261120
    %v298 = vsel %vm296, %v294, 0
    %v301 = vsel %vm296, %v295, 0
    %303 = vmatpush.bf16.msra.mxu0 0
    %304 = vmatpush.bf16.msra.mxu0 0
    %305 = vmatpush.bf16.msra.mxu0 0
    %306 = vmatpush.bf16.msra.mxu0 0
    %307 = vmatpush.bf16.msra.mxu0 0
    %308 = vmatpush.bf16.msra.mxu0 0
    %309 = vmatpush.bf16.msra.mxu0 %v281
    %310 = vmatpush.bf16.msra.mxu0 %v280
    %311 = vmatmul.bf16.gmra.mxu0 %v298
    %v312 = vpop.f32.mrf.mxu0
    %v313 = vadd.f32 %v284, %v312
    %v314 = vpop.f32.mrf.mxu0
    %v315 = vadd.f32 %v284, %v314
    %316 = vmatmul.bf16.gmra.mxu0 %v301
    %v317 = vpop.f32.mrf.mxu0
    %v318 = vadd.f32 %v284, %v317
    %v319 = vpop.f32.mrf.mxu0
    %v320 = vadd.f32 %v284, %v319
    %321 = vdwg.mxu0
    %v322 = vmax.f32 %v313, 0.0
    %v323 = vmax.f32 %v315, 0.0
    %v324 = vmax.f32 %v318, 0.0
    %v325 = vmax.f32 %v320, 0.0
    %v326 = vpack.c.bf16 %v323, %v322
    %v327 = vpack.c.bf16 %v325, %v324
    %v328 = vld [vmem:[#allocation8] sm:$0xf]
    %v329 = vld [vmem:[#allocation8 + $0x4] sm:$0xf]
    %v330 = vld [vmem:[#allocation8 + $0x8] sm:$0xf]
    %v331 = vld [vmem:[#allocation8 + $0xc] sm:$0xf]
    %v332 = vld [vmem:[#allocation8 + $0x10] sm:$0xf]
    %v333 = vld [vmem:[#allocation8 + $0x14] sm:$0xf]
    %v334 = vld [vmem:[#allocation8 + $0x18] sm:$0xf]
    %v335 = vld [vmem:[#allocation8 + $0x1c] sm:$0xf]
    %v336 = vld [vmem:[#allocation8 + $0x20] sm:$0xf]
    %v337 = vld [vmem:[#allocation8 + $0x24] sm:$0xf]
    %v338 = vld [vmem:[#allocation8 + $0x28] sm:$0xf]
    %v339 = vld [vmem:[#allocation8 + $0x2c] sm:$0xf]
    %v340 = vld [vmem:[#allocation8 + $0x30] sm:$0xf]
    %v341 = vld [vmem:[#allocation8 + $0x34] sm:$0xf]
    %v342 = vld [vmem:[#allocation8 + $0x38] sm:$0xf]
    %v343 = vld [vmem:[#allocation8 + $0x3c] sm:$0xf]
    %v360 = vunpack.c.l.b16 %v328
    %v361 = vunpack.c.l.b16 %v329
    %v362 = vunpack.c.l.b16 %v330
    %v363 = vunpack.c.l.b16 %v331
    %v364 = vunpack.c.l.b16 %v332
    %v365 = vunpack.c.l.b16 %v333
    %v366 = vunpack.c.l.b16 %v334
    %v367 = vunpack.c.l.b16 %v335
    %v368 = vunpack.c.l.b16 %v336
    %v369 = vunpack.c.l.b16 %v337
    %v370 = vunpack.c.l.b16 %v338
    %v371 = vunpack.c.l.b16 %v339
    %v372 = vunpack.c.l.b16 %v340
    %v373 = vunpack.c.l.b16 %v341
    %v374 = vunpack.c.l.b16 %v342
    %v375 = vunpack.c.l.b16 %v343
    %v376 = vpack.c.b16 %v361, %v360
    %v377 = vpack.c.b16 %v363, %v362
    %v378 = vpack.c.b16 %v365, %v364
    %v379 = vpack.c.b16 %v367, %v366
    %v380 = vpack.c.b16 %v369, %v368
    %v381 = vpack.c.b16 %v371, %v370
    %v382 = vpack.c.b16 %v373, %v372
    %v383 = vpack.c.b16 %v375, %v374
    %392 = vmatpush.bf16.msra.mxu0 %v383
    %393 = vmatpush.bf16.msra.mxu0 %v382
    %394 = vmatpush.bf16.msra.mxu0 %v381
    %395 = vmatpush.bf16.msra.mxu0 %v380
    %396 = vmatpush.bf16.msra.mxu0 %v379
    %397 = vmatpush.bf16.msra.mxu0 %v378
    %398 = vmatpush.bf16.msra.mxu0 %v377
    %399 = vmatpush.bf16.msra.mxu0 %v376
    %400 = vmatmul.bf16.gmra.mxu0 %v326
    %v401 = vpop.f32.mrf.mxu0
    %v402 = vadd.f32 0.0, %v401
    %v403 = vpop.f32.mrf.mxu0
    %v404 = vadd.f32 0.0, %v403
    %405 = vmatmul.bf16.gmra.mxu0 %v327
    %v406 = vpop.f32.mrf.mxu0
    %v407 = vadd.f32 0.0, %v406
    %v408 = vpop.f32.mrf.mxu0
    %v409 = vadd.f32 0.0, %v408
    %410 = vdwg.mxu0
    %v411 = vpack.c.bf16 %v404, %v402
    %v412 = vpack.c.bf16 %v409, %v407
    %v413 = vld [vmem:[%s5] sm:$0x1]
    %v415 = vperm.slane %v413, 0
    %417 = vmatpush.bf16.msra.mxu0 0
    %418 = vmatpush.bf16.msra.mxu0 0
    %419 = vmatpush.bf16.msra.mxu0 0
    %420 = vmatpush.bf16.msra.mxu0 0
    %421 = vmatpush.bf16.msra.mxu0 0
    %422 = vmatpush.bf16.msra.mxu0 0
    %423 = vmatpush.bf16.msra.mxu0 %v412
    %424 = vmatpush.bf16.msra.mxu0 %v411
    %425 = vmatmul.bf16.gmra.mxu0 %v298
    %v426 = vpop.f32.mrf.mxu0
    %v427 = vadd.f32 %v415, %v426
    %v428 = vpop.f32.mrf.mxu0
    %v429 = vadd.f32 %v415, %v428
    %430 = vmatmul.bf16.gmra.mxu0 %v301
    %v431 = vpop.f32.mrf.mxu0
    %v432 = vadd.f32 %v415, %v431
    %v433 = vpop.f32.mrf.mxu0
    %v434 = vadd.f32 %v415, %v433
    %435 = vdwg.mxu0
    %v436 = vmax.f32 %v427, 0.0
    %v437 = vmax.f32 %v429, 0.0
    %v438 = vmax.f32 %v432, 0.0
    %v439 = vmax.f32 %v434, 0.0
    %v440 = vpack.c.bf16 %v437, %v436
    %v441 = vpack.c.bf16 %v439, %v438
    %v442 = vld [vmem:[#allocation10] sm:$0xf]
    %v443 = vld [vmem:[#allocation10 + $0x4] sm:$0xf]
    %v444 = vld [vmem:[#allocation10 + $0x8] sm:$0xf]
    %v445 = vld [vmem:[#allocation10 + $0xc] sm:$0xf]
    %v446 = vld [vmem:[#allocation10 + $0x10] sm:$0xf]
    %v447 = vld [vmem:[#allocation10 + $0x14] sm:$0xf]
    %v448 = vld [vmem:[#allocation10 + $0x18] sm:$0xf]
    %v449 = vld [vmem:[#allocation10 + $0x1c] sm:$0xf]
    %v450 = vld [vmem:[#allocation10 + $0x20] sm:$0xf]
    %v451 = vld [vmem:[#allocation10 + $0x24] sm:$0xf]
    %v452 = vld [vmem:[#allocation10 + $0x28] sm:$0xf]
    %v453 = vld [vmem:[#allocation10 + $0x2c] sm:$0xf]
    %v454 = vld [vmem:[#allocation10 + $0x30] sm:$0xf]
    %v455 = vld [vmem:[#allocation10 + $0x34] sm:$0xf]
    %v456 = vld [vmem:[#allocation10 + $0x38] sm:$0xf]
    %v457 = vld [vmem:[#allocation10 + $0x3c] sm:$0xf]
    %v474 = vunpack.c.l.b16 %v442
    %v475 = vunpack.c.l.b16 %v443
    %v476 = vunpack.c.l.b16 %v444
    %v477 = vunpack.c.l.b16 %v445
    %v478 = vunpack.c.l.b16 %v446
    %v479 = vunpack.c.l.b16 %v447
    %v480 = vunpack.c.l.b16 %v448
    %v481 = vunpack.c.l.b16 %v449
    %v482 = vunpack.c.l.b16 %v450
    %v483 = vunpack.c.l.b16 %v451
    %v484 = vunpack.c.l.b16 %v452
    %v485 = vunpack.c.l.b16 %v453
    %v486 = vunpack.c.l.b16 %v454
    %v487 = vunpack.c.l.b16 %v455
    %v488 = vunpack.c.l.b16 %v456
    %v489 = vunpack.c.l.b16 %v457
    %v490 = vpack.c.b16 %v475, %v474
    %v491 = vpack.c.b16 %v477, %v476
    %v492 = vpack.c.b16 %v479, %v478
    %v493 = vpack.c.b16 %v481, %v480
    %v494 = vpack.c.b16 %v483, %v482
    %v495 = vpack.c.b16 %v485, %v484
    %v496 = vpack.c.b16 %v487, %v486
    %v497 = vpack.c.b16 %v489, %v488
    %506 = vmatpush.bf16.msra.mxu0 %v497
    %507 = vmatpush.bf16.msra.mxu0 %v496
    %508 = vmatpush.bf16.msra.mxu0 %v495
    %509 = vmatpush.bf16.msra.mxu0 %v494
    %510 = vmatpush.bf16.msra.mxu0 %v493
    %511 = vmatpush.bf16.msra.mxu0 %v492
    %512 = vmatpush.bf16.msra.mxu0 %v491
    %513 = vmatpush.bf16.msra.mxu0 %v490
    %514 = vmatmul.bf16.gmra.mxu0 %v440
    %v515 = vpop.f32.mrf.mxu0
    %v516 = vadd.f32 0.0, %v515
    %v517 = vpop.f32.mrf.mxu0
    %v518 = vadd.f32 0.0, %v517
    %519 = vmatmul.bf16.gmra.mxu0 %v441
    %v520 = vpop.f32.mrf.mxu0
    %v521 = vadd.f32 0.0, %v520
    %v522 = vpop.f32.mrf.mxu0
    %v523 = vadd.f32 0.0, %v522
    %524 = vdwg.mxu0
    %v525 = vpack.c.bf16 %v518, %v516
    %v526 = vpack.c.bf16 %v523, %v521
    %v527 = vld [vmem:[%s7] sm:$0x1]
    %v529 = vperm.slane %v527, 0
    %531 = vmatpush.bf16.msra.mxu0 0
    %532 = vmatpush.bf16.msra.mxu0 0
    %533 = vmatpush.bf16.msra.mxu0 0
    %534 = vmatpush.bf16.msra.mxu0 0
    %535 = vmatpush.bf16.msra.mxu0 0
    %536 = vmatpush.bf16.msra.mxu0 0
    %537 = vmatpush.bf16.msra.mxu0 %v526
    %538 = vmatpush.bf16.msra.mxu0 %v525
    %539 = vmatmul.bf16.gmra.mxu0 %v298
    %v540 = vpop.f32.mrf.mxu0
    %v541 = vadd.f32 %v529, %v540
    %v542 = vpop.f32.mrf.mxu0
    %v543 = vadd.f32 %v529, %v542
    %544 = vmatmul.bf16.gmra.mxu0 %v301
    %v545 = vpop.f32.mrf.mxu0
    %v546 = vadd.f32 %v529, %v545
    %v547 = vpop.f32.mrf.mxu0
    %v548 = vadd.f32 %v529, %v547
    %549 = vdwg.mxu0
    %v550 = vmax.f32 %v541, 0.0
    %v551 = vmax.f32 %v543, 0.0
    %v552 = vmax.f32 %v546, 0.0
    %v553 = vmax.f32 %v548, 0.0
    %v554 = vld [vmem:[%s8] sm:$0x1]
    %v555 = vpack.c.bf16 %v551, %v550
    %v556 = vpack.c.bf16 %v553, %v552
    %v558 = vsel %vm296, %v554, 0
    %560 = vmatpush.bf16.msra.mxu0 0
    %561 = vmatpush.bf16.msra.mxu0 0
    %562 = vmatpush.bf16.msra.mxu0 0
    %563 = vmatpush.bf16.msra.mxu0 0
    %564 = vmatpush.bf16.msra.mxu0 0
    %565 = vmatpush.bf16.msra.mxu0 0
    %566 = vmatpush.bf16.msra.mxu0 %v556
    %567 = vmatpush.bf16.msra.mxu0 %v555
    %568 = vmatmul.bf16.gmra.mxu0 %v558
    %v569 = vpop.f32.mrf.mxu0
    %v570 = vadd.f32 0.0, %v569
    %v571 = vpop.f32.mrf.mxu0
    %572 = vdwg.mxu0
    %v573 = vpack.c.bf16 %v570, %v570
    %v574 = vld [vmem:[#allocation11] sm:$0xf]
    %v575 = vld [vmem:[#allocation11 + $0x4] sm:$0xf]
    %v576 = vld [vmem:[#allocation11 + $0x8] sm:$0xf]
    %v577 = vld [vmem:[#allocation11 + $0xc] sm:$0xf]
    %v578 = vld [vmem:[#allocation11 + $0x10] sm:$0xf]
    %v579 = vld [vmem:[#allocation11 + $0x14] sm:$0xf]
    %v580 = vld [vmem:[#allocation11 + $0x18] sm:$0xf]
    %v581 = vld [vmem:[#allocation11 + $0x1c] sm:$0xf]
    %v582 = vld [vmem:[#allocation11 + $0x20] sm:$0xf]
    %v583 = vld [vmem:[#allocation11 + $0x24] sm:$0xf]
    %v584 = vld [vmem:[#allocation11 + $0x28] sm:$0xf]
    %v585 = vld [vmem:[#allocation11 + $0x2c] sm:$0xf]
    %v586 = vld [vmem:[#allocation11 + $0x30] sm:$0xf]
    %v587 = vld [vmem:[#allocation11 + $0x34] sm:$0xf]
    %v588 = vld [vmem:[#allocation11 + $0x38] sm:$0xf]
    %v589 = vld [vmem:[#allocation11 + $0x3c] sm:$0xf]
    %v590 = vld [vmem:[%s10] sm:$0x1]
    %v592 = vperm.slane %v590, 0
    %v610 = vunpack.c.l.b16 %v574
    %v611 = vunpack.c.l.b16 %v575
    %v612 = vunpack.c.l.b16 %v576
    %v613 = vunpack.c.l.b16 %v577
    %v614 = vunpack.c.l.b16 %v578
    %v615 = vunpack.c.l.b16 %v579
    %v616 = vunpack.c.l.b16 %v580
    %v617 = vunpack.c.l.b16 %v581
    %v618 = vunpack.c.l.b16 %v582
    %v619 = vunpack.c.l.b16 %v583
    %v620 = vunpack.c.l.b16 %v584
    %v621 = vunpack.c.l.b16 %v585
    %v622 = vunpack.c.l.b16 %v586
    %v623 = vunpack.c.l.b16 %v587
    %v624 = vunpack.c.l.b16 %v588
    %v625 = vunpack.c.l.b16 %v589
    %v626 = vpack.c.b16 %v611, %v610
    %v627 = vpack.c.b16 %v613, %v612
    %v628 = vpack.c.b16 %v615, %v614
    %v629 = vpack.c.b16 %v617, %v616
    %v630 = vpack.c.b16 %v619, %v618
    %v631 = vpack.c.b16 %v621, %v620
    %v632 = vpack.c.b16 %v623, %v622
    %v633 = vpack.c.b16 %v625, %v624
    %642 = vmatpush.bf16.msra.mxu0 %v633
    %643 = vmatpush.bf16.msra.mxu0 %v632
    %644 = vmatpush.bf16.msra.mxu0 %v631
    %645 = vmatpush.bf16.msra.mxu0 %v630
    %646 = vmatpush.bf16.msra.mxu0 %v629
    %647 = vmatpush.bf16.msra.mxu0 %v628
    %648 = vmatpush.bf16.msra.mxu0 %v627
    %649 = vmatpush.bf16.msra.mxu0 %v626
    %650 = vmatmul.bf16.gmra.mxu0 %v573
    %v651 = vpop.f32.mrf.mxu0
    %v652 = vadd.f32 %v592, %v651
    %v653 = vpop.f32.mrf.mxu0
    %654 = vdwg.mxu0
    %v655 = vmax.f32 %v652, 0.0
    %v656 = vpack.c.bf16 %v655, %v655
    %v657 = vld [vmem:[#allocation13] sm:$0xf]
    %v658 = vld [vmem:[#allocation13 + $0x4] sm:$0xf]
    %v659 = vld [vmem:[#allocation13 + $0x8] sm:$0xf]
    %v660 = vld [vmem:[#allocation13 + $0xc] sm:$0xf]
    %v661 = vld [vmem:[#allocation13 + $0x10] sm:$0xf]
    %v662 = vld [vmem:[#allocation13 + $0x14] sm:$0xf]
    %v663 = vld [vmem:[#allocation13 + $0x18] sm:$0xf]
    %v664 = vld [vmem:[#allocation13 + $0x1c] sm:$0xf]
    %v665 = vld [vmem:[#allocation13 + $0x20] sm:$0xf]
    %v666 = vld [vmem:[#allocation13 + $0x24] sm:$0xf]
    %v667 = vld [vmem:[#allocation13 + $0x28] sm:$0xf]
    %v668 = vld [vmem:[#allocation13 + $0x2c] sm:$0xf]
    %v669 = vld [vmem:[#allocation13 + $0x30] sm:$0xf]
    %v670 = vld [vmem:[#allocation13 + $0x34] sm:$0xf]
    %v671 = vld [vmem:[#allocation13 + $0x38] sm:$0xf]
    %v672 = vld [vmem:[#allocation13 + $0x3c] sm:$0xf]
    %v673 = vld [vmem:[%s12] sm:$0x1]
    %v675 = vperm.slane %v673, 0
    %v693 = vunpack.c.l.b16 %v657
    %v694 = vunpack.c.l.b16 %v658
    %v695 = vunpack.c.l.b16 %v659
    %v696 = vunpack.c.l.b16 %v660
    %v697 = vunpack.c.l.b16 %v661
    %v698 = vunpack.c.l.b16 %v662
    %v699 = vunpack.c.l.b16 %v663
    %v700 = vunpack.c.l.b16 %v664
    %v701 = vunpack.c.l.b16 %v665
    %v702 = vunpack.c.l.b16 %v666
    %v703 = vunpack.c.l.b16 %v667
    %v704 = vunpack.c.l.b16 %v668
    %v705 = vunpack.c.l.b16 %v669
    %v706 = vunpack.c.l.b16 %v670
    %v707 = vunpack.c.l.b16 %v671
    %v708 = vunpack.c.l.b16 %v672
    %v709 = vpack.c.b16 %v694, %v693
    %v710 = vpack.c.b16 %v696, %v695
    %v711 = vpack.c.b16 %v698, %v697
    %v712 = vpack.c.b16 %v700, %v699
    %v713 = vpack.c.b16 %v702, %v701
    %v714 = vpack.c.b16 %v704, %v703
    %v715 = vpack.c.b16 %v706, %v705
    %v716 = vpack.c.b16 %v708, %v707
    %725 = vmatpush.bf16.msra.mxu0 %v716
    %726 = vmatpush.bf16.msra.mxu0 %v715
    %727 = vmatpush.bf16.msra.mxu0 %v714
    %728 = vmatpush.bf16.msra.mxu0 %v713
    %729 = vmatpush.bf16.msra.mxu0 %v712
    %730 = vmatpush.bf16.msra.mxu0 %v711
    %731 = vmatpush.bf16.msra.mxu0 %v710
    %732 = vmatpush.bf16.msra.mxu0 %v709
    %733 = vmatmul.bf16.gmra.mxu0 %v656
    %v734 = vpop.f32.mrf.mxu0
    %v735 = vadd.f32 %v675, %v734
    %v736 = vpop.f32.mrf.mxu0
    %737 = vdwg.mxu0
    %v738 = vmax.f32 %v735, 0.0
    %v739 = vpack.c.bf16 %v738, %v738
    %v740 = vld [vmem:[#allocation14] sm:$0xf]
    %v741 = vld [vmem:[#allocation14 + $0x4] sm:$0xf]
    %v742 = vld [vmem:[#allocation14 + $0x8] sm:$0xf]
    %v743 = vld [vmem:[#allocation14 + $0xc] sm:$0xf]
    %v744 = vld [vmem:[#allocation14 + $0x10] sm:$0xf]
    %v745 = vld [vmem:[#allocation14 + $0x14] sm:$0xf]
    %v746 = vld [vmem:[#allocation14 + $0x18] sm:$0xf]
    %v747 = vld [vmem:[#allocation14 + $0x1c] sm:$0xf]
    %v748 = vld [vmem:[#allocation14 + $0x20] sm:$0xf]
    %v749 = vld [vmem:[#allocation14 + $0x24] sm:$0xf]
    %v750 = vld [vmem:[#allocation14 + $0x28] sm:$0xf]
    %v751 = vld [vmem:[#allocation14 + $0x2c] sm:$0xf]
    %v752 = vld [vmem:[#allocation14 + $0x30] sm:$0xf]
    %v753 = vld [vmem:[#allocation14 + $0x34] sm:$0xf]
    %v754 = vld [vmem:[#allocation14 + $0x38] sm:$0xf]
    %v755 = vld [vmem:[#allocation14 + $0x3c] sm:$0xf]
    %v756 = vld [vmem:[%s14] sm:$0x1]
    %v758 = vperm.slane %v756, 0
    %v776 = vunpack.c.l.b16 %v740
    %v777 = vunpack.c.l.b16 %v741
    %v778 = vunpack.c.l.b16 %v742
    %v779 = vunpack.c.l.b16 %v743
    %v780 = vunpack.c.l.b16 %v744
    %v781 = vunpack.c.l.b16 %v745
    %v782 = vunpack.c.l.b16 %v746
    %v783 = vunpack.c.l.b16 %v747
    %v784 = vunpack.c.l.b16 %v748
    %v785 = vunpack.c.l.b16 %v749
    %v786 = vunpack.c.l.b16 %v750
    %v787 = vunpack.c.l.b16 %v751
    %v788 = vunpack.c.l.b16 %v752
    %v789 = vunpack.c.l.b16 %v753
    %v790 = vunpack.c.l.b16 %v754
    %v791 = vunpack.c.l.b16 %v755
    %v792 = vpack.c.b16 %v777, %v776
    %v793 = vpack.c.b16 %v779, %v778
    %v794 = vpack.c.b16 %v781, %v780
    %v795 = vpack.c.b16 %v783, %v782
    %v796 = vpack.c.b16 %v785, %v784
    %v797 = vpack.c.b16 %v787, %v786
    %v798 = vpack.c.b16 %v789, %v788
    %v799 = vpack.c.b16 %v791, %v790
    %808 = vmatpush.bf16.msra.mxu0 %v799
    %809 = vmatpush.bf16.msra.mxu0 %v798
    %810 = vmatpush.bf16.msra.mxu0 %v797
    %811 = vmatpush.bf16.msra.mxu0 %v796
    %812 = vmatpush.bf16.msra.mxu0 %v795
    %813 = vmatpush.bf16.msra.mxu0 %v794
    %814 = vmatpush.bf16.msra.mxu0 %v793
    %815 = vmatpush.bf16.msra.mxu0 %v792
    %816 = vmatmul.bf16.gmra.mxu0 %v739
    %v817 = vpop.f32.mrf.mxu0
    %v818 = vadd.f32 %v758, %v817
    %v819 = vpop.f32.mrf.mxu0
    %820 = vdwg.mxu0
    %v821 = vmax.f32 %v818, 0.0
    %822 = vst [vmem:[#allocation16] sm:$0x3] %v821
    // Predicated region
    $region94: #{tpu_custom_call.1} parent=1 // pred_check
      _
    $region95: #{tpu_custom_call.1} parent=1 // pred_check_branch
      %824 = sbr.rel (0) target = $region97
    $region96: #{tpu_custom_call.1} parent=1 // pred_region
      %826 = vsyncadd [#allocation4], 0
      %s828 = sshll.u32 [#allocation16], 4
      %s829 = int_to_ptr.vmem [resolvable:$true] %s828
      %s830 = sshll.u32 %s15, 4
      %s831 = int_to_ptr.hbm [resolvable:$true] %s830
      %833 = dma.vmem_to_hbm [thread:$0]  %s829, 32, %s831, [#allocation4]
    $region97: #{tpu_custom_call.1} parent=1 // pred_fallthru
      _
    // Predicated region
    $region98: #{tpu_custom_call.1} parent=1 // pred_check
      _
    $region99: #{tpu_custom_call.1} parent=1 // pred_check_branch
      %835 = sbr.rel (0) target = $region101
    $region100: #{tpu_custom_call.1} parent=1 // pred_region
      %837 = dma.done [#allocation4], 32
    $region101: #{tpu_custom_call.1} parent=1 // pred_fallthru
      _
    %838 = vsyncpa [#allocation3], 1
    %839 = vsyncpa [#allocation6], 1
    %840 = vsyncpa [#allocation9], 1
    %841 = vsyncpa [#allocation12], 1
    %842 = vsyncpa [#allocation15], 1
    %843 = vsyncpa [#allocation4], 1

</llo_original>
